<compile_context>
chip_gen: v6e
topology: v6e:2x2x1
jax: 0.10.0
libtpu: 0.0.40
codegen_flags: <defaults>
</compile_context>

<pallas_src>
import functools

import jax
import jax.numpy as jnp
from jax import lax
from jax.experimental import pallas as pl
from jax.experimental.pallas import tpu as pltpu

_VMEM_LIMIT = 64 * 1024 * 1024    # raised scoped-VMEM limit (still <= v7x physical)
_WS_BUDGET = 32 * 1024 * 1024     # per-kernel working-set budget used for tile sizing


# ----------------------------------------------------------------------------
# Kernels
# ----------------------------------------------------------------------------
def _matmul_bias_relu_kernel(x_ref, w_ref, b_ref, o_ref):
    # x: (TM, Cin)  w: (Cin, Cout) with the Affine scale pre-folded  b: (1, Cout)
    y = jnp.dot(x_ref[...], w_ref[...], preferred_element_type=jnp.float32)
    o_ref[...] = jnp.maximum(y + b_ref[...], 0.0).astype(o_ref.dtype)


def _matmul_bias_add_relu_kernel(x_ref, w_ref, b_ref, r_ref, o_ref):
    # Same as above plus the fused residual tile r (TM, Cout) before the ReLU.
    y = jnp.dot(x_ref[...], w_ref[...], preferred_element_type=jnp.float32)
    o_ref[...] = jnp.maximum(y + b_ref[...] + r_ref[...], 0.0).astype(o_ref.dtype)


def _dwconv3_bias_relu_kernel(x_ref, w_ref, b_ref, o_ref, xp_ref, *, strides):
    # x_ref : (1, T, H, W, Ct)    unpadded channel tile
    # w_ref : (3, 3, 3, Ct)       depthwise filter (Affine scale pre-folded)
    # b_ref : (1, Ct)
    # o_ref : (1, To, Ho, Wo, Ct) strided output
    # xp_ref: (T+2, H+2, W+2, Ct) VMEM scratch used as zero-padded staging buffer
    st, sh, sw = strides
    _, T, H, W, Ct = x_ref.shape
    # In-kernel zero padding: no padded activation copy ever touches HBM.
    xp_ref[...] = jnp.zeros_like(xp_ref)
    xp_ref[1:T + 1, 1:H + 1, 1:W + 1, :] = x_ref[0]
    w = w_ref[...]
    acc = jnp.zeros((T, H, W, Ct), jnp.float32)
    for kt in range(3):
        for kh in range(3):
            for kw in range(3):
                acc = acc + w[kt, kh, kw] * xp_ref[kt:kt + T, kh:kh + H, kw:kw + W, :]
    if (st, sh, sw) != (1, 1, 1):
        # Only the surviving rows/cols are written back to HBM.
        # TODO(synk): compute only the strided taps instead of subsampling full-res.
        acc = acc[::st, ::sh, ::sw, :]
    o_ref[...] = jnp.maximum(acc + b_ref[...], 0.0)[None].astype(o_ref.dtype)


# ----------------------------------------------------------------------------
# Pallas wrappers
# ----------------------------------------------------------------------------
def _choose_tm(M, cin, cout, itemsize, n_row_streams, tm_max=512):
    """Largest row tile whose double-buffered working set fits the VMEM budget
    (keeps the kernel pipelined even on v7x's 64 MiB VMEM)."""
    def working_set(t):
        rows = 2 * t * (cin + (n_row_streams - 1) * cout) * itemsize  # dbl-buffered tiles
        return rows + 2 * cin * cout * itemsize                       # + weight
    tm = tm_max
    while tm > 8 and working_set(tm) > _WS_BUDGET:
        tm //= 2
    if M <= tm:
        return M                       # single full-extent block is always legal
    return max(8, (tm // 8) * 8)       # keep sublane (8) alignment for partial tiling


def _pointwise_bias_relu(x2d, w, b, tm_max=512):
    M, cin = x2d.shape
    cout = w.shape[1]
    tm = _choose_tm(M, cin, cout, x2d.dtype.itemsize, n_row_streams=2, tm_max=tm_max)
    return pl.pallas_call(
        _matmul_bias_relu_kernel,
        out_shape=jax.ShapeDtypeStruct((M, cout), x2d.dtype),
        grid=(pl.cdiv(M, tm),),          # ragged tail handled by Pallas masking
        in_specs=[
            pl.BlockSpec((tm, cin), lambda i: (i, 0)),
            pl.BlockSpec((cin, cout), lambda i: (0, 0)),
            pl.BlockSpec((1, cout), lambda i: (0, 0)),
        ],
        out_specs=pl.BlockSpec((tm, cout), lambda i: (i, 0)),
        compiler_params=pltpu.CompilerParams(
            dimension_semantics=("parallel",),
            vmem_limit_bytes=_VMEM_LIMIT),
    )(x2d, w, b)


def _pointwise_bias_add_relu(x2d, w, b, res2d, tm_max=512):
    M, cin = x2d.shape
    cout = w.shape[1]
    tm = _choose_tm(M, cin, cout, x2d.dtype.itemsize, n_row_streams=3, tm_max=tm_max)
    return pl.pallas_call(
        _matmul_bias_add_relu_kernel,
        out_shape=jax.ShapeDtypeStruct((M, cout), x2d.dtype),
        grid=(pl.cdiv(M, tm),),
        in_specs=[
            pl.BlockSpec((tm, cin), lambda i: (i, 0)),
            pl.BlockSpec((cin, cout), lambda i: (0, 0)),
            pl.BlockSpec((1, cout), lambda i: (0, 0)),
            pl.BlockSpec((tm, cout), lambda i: (i, 0)),
        ],
        out_specs=pl.BlockSpec((tm, cout), lambda i: (i, 0)),
        compiler_params=pltpu.CompilerParams(
            dimension_semantics=("parallel",),
            vmem_limit_bytes=_VMEM_LIMIT),
    )(x2d, w, b, res2d)


def _dwconv3_bias_relu(x, w, b, strides=(1, 1, 1)):
    # x: (N, T, H, W, C) -> (N, To, Ho, Wo, C); depthwise 3x3x3 conv, padding 1.
    N, T, H, W, C = x.shape
    st, sh, sw = strides
    To = (T - 1) // st + 1
    Ho = (H - 1) // sh + 1
    Wo = (W - 1) // sw + 1
    # Channels are independent for a depthwise conv -> tile them so the VMEM
    # working set stays bounded at real ir-CSN-152 sizes.
    ct = 128 if C % 128 == 0 else C
    # TODO(synk): also tile T (halo slabs via manual DMA) for very large T*H*W volumes.
    kernel = functools.partial(_dwconv3_bias_relu_kernel, strides=strides)
    return pl.pallas_call(
        kernel,
        out_shape=jax.ShapeDtypeStruct((N, To, Ho, Wo, C), x.dtype),
        grid=(N, C // ct),
        in_specs=[
            pl.BlockSpec((1, T, H, W, ct), lambda n, c: (n, 0, 0, 0, c)),
            pl.BlockSpec((3, 3, 3, ct), lambda n, c: (0, 0, 0, c)),
            pl.BlockSpec((1, ct), lambda n, c: (0, c)),
        ],
        out_specs=pl.BlockSpec((1, To, Ho, Wo, ct), lambda n, c: (n, 0, 0, 0, c)),
        scratch_shapes=[pltpu.VMEM((T + 2, H + 2, W + 2, ct), jnp.float32)],
        compiler_params=pltpu.CompilerParams(
            dimension_semantics=("parallel", "parallel"),
            vmem_limit_bytes=_VMEM_LIMIT),
    )(x, w, b)


# ----------------------------------------------------------------------------
# Full bottleneck forward
# ----------------------------------------------------------------------------
def resnext_bottleneck_forward_ndhwc(x, params, stride=1, temporal_stride=1):
    """Channels-last (NDHWC) forward; chain blocks through this entry point to
    avoid the NCDHW<->NDHWC relayout per block."""
    N, T, H, W, cin = x.shape
    planes = params["w1"].shape[1]
    cout = params["w4"].shape[1]
    if stride != 1 or temporal_stride != 1 or cin != cout:
        # With down_sample=None (module default) the residual add would be
        # shape-mismatched for these configs — reject instead of misaligning.
        # TODO(synk): down_sample branch not implemented (module default is None).
        raise NotImplementedError(
            "down_sample path (strided / channel-changing residual) not implemented")

    # Fold the Affine scales into the conv weights (tiny host-side weight op).
    w1 = params["w1"] * params["a1"]          # (Cin, P)   * (1, P)
    w3 = params["w3"] * params["a3"][0]       # (3,3,3,P)  * (P,)
    w4 = params["w4"] * params["a4"]          # (P, Cout)  * (1, Cout)

    # conv1 (1x1x1) + Affine + ReLU
    y = _pointwise_bias_relu(x.reshape(-1, cin), w1, params["b1"])
    y = y.reshape(N, T, H, W, planes)

    # conv3 (3x3x3 depthwise) + Affine + ReLU
    y = _dwconv3_bias_relu(y, w3, params["b3"],
                           strides=(temporal_stride, stride, stride))
    No, To, Ho, Wo, _ = y.shape

    # conv4 (1x1x1) + Affine + residual add + ReLU (residual fused in-kernel)
    out = _pointwise_bias_add_relu(y.reshape(-1, planes), w4, params["b4"],
                                   x.reshape(-1, cout))
    return out.reshape(No, To, Ho, Wo, cout)


def resnext_bottleneck_forward(x_ncdhw, params, stride=1, temporal_stride=1):
    # PyTorch NCDHW boundary wrapper.
    x = jnp.transpose(x_ncdhw, (0, 2, 3, 4, 1))                    # NCDHW -> NDHWC
    out = resnext_bottleneck_forward_ndhwc(x, params, stride, temporal_stride)
    return jnp.transpose(out, (0, 4, 1, 2, 3))                     # NDHWC -> NCDHW


# ----------------------------------------------------------------------------
# Pure-JAX reference (independent of the kernels) for correctness check
# ----------------------------------------------------------------------------
def reference_forward(x, params, stride=1, temporal_stride=1):
    def affine(y, a, b):
        return y * a[0][None, :, None, None, None] + b[0][None, :, None, None, None]

    dn = ("NCDHW", "OIDHW", "NCDHW")
    planes = params["w1"].shape[1]

    w1 = jnp.transpose(params["w1"])[:, :, None, None, None]
    out = lax.conv_general_dilated(x, w1, (1, 1, 1), "VALID", dimension_numbers=dn)
    out = jnp.maximum(affine(out, params["a1"], params["b1"]), 0.0)

    w3 = jnp.transpose(params["w3"], (3, 0, 1, 2))[:, None]
    out = lax.conv_general_dilated(
        out, w3, (temporal_stride, stride, stride),
        [(1, 1), (1, 1), (1, 1)], dimension_numbers=dn, feature_group_count=planes)
    out = jnp.maximum(affine(out, params["a3"], params["b3"]), 0.0)

    w4 = jnp.transpose(params["w4"])[:, :, None, None, None]
    out = lax.conv_general_dilated(out, w4, (1, 1, 1), "VALID", dimension_numbers=dn)
    out = affine(out, params["a4"], params["b4"]) + x
    return jnp.maximum(out, 0.0)


# ----------------------------------------------------------------------------
if __name__ == "__main__":
    # Small shapes consistent with the module; down_sample=None requires
    # in_planes == planes * expansion and stride == 1.
    in_planes, planes, expansion = 8, 4, 2
    N, T, H, W = 2, 4, 8, 8

    key = jax.random.PRNGKey(0)
    ks = jax.random.split(key, 10)
    params = {
        # conv1 weight, stored (Cin, P)   [PyTorch: (P, Cin, 1, 1, 1)]
        "w1": 0.1 * jax.random.normal(ks[0], (in_planes, planes), jnp.float32),
        "a1": jax.random.normal(ks[1], (1, planes), jnp.float32),
        "b1": jax.random.normal(ks[2], (1, planes), jnp.float32),
        # conv3 depthwise weight, stored (3, 3, 3, P)  [PyTorch: (P, 1, 3, 3, 3)]
        "w3": 0.1 * jax.random.normal(ks[3], (3, 3, 3, planes), jnp.float32),
        "a3": jax.random.normal(ks[4], (1, planes), jnp.float32),
        "b3": jax.random.normal(ks[5], (1, planes), jnp.float32),
        # conv4 weight, stored (P, P*expansion)  [PyTorch: (P*exp, P, 1, 1, 1)]
        "w4": 0.1 * jax.random.normal(ks[6], (planes, planes * expansion), jnp.float32),
        "a4": jax.random.normal(ks[7], (1, planes * expansion), jnp.float32),
        "b4": jax.random.normal(ks[8], (1, planes * expansion), jnp.float32),
    }
    x = jax.random.normal(ks[9], (N, in_planes, T, H, W), jnp.float32)  # NCDHW

    out = resnext_bottleneck_forward(x, params, stride=1, temporal_stride=1)
    out = jax.block_until_ready(out)

    ref = reference_forward(x, params, stride=1, temporal_stride=1)
    assert out.shape == ref.shape == (N, planes * expansion, T, H, W)
    assert jnp.allclose(out, ref, rtol=1e-4, atol=1e-4), (
        float(jnp.max(jnp.abs(out - ref))))

    print("KERNEL_OK")
</pallas_src>

<mosaic_0001>
module attributes {stable_mosaic.version = 11 : i64} {
  func.func @_matmul_bias_relu_kernel(%arg0: i32, %arg1: memref<512x8xf32, #tpu.memory_space<vmem>>, %arg2: memref<8x4xf32, #tpu.memory_space<vmem>>, %arg3: memref<1x4xf32, #tpu.memory_space<vmem>>, %arg4: memref<512x4xf32, #tpu.memory_space<vmem>>) attributes {dimension_semantics = [#tpu.dimension_semantics<parallel>], iteration_bounds = array<i64: 1>, scalar_prefetch = 0 : i64, scratch_operands = 0 : i64, tpu.core_type = #tpu.core_type<tc>, window_params = [{transform_indices = @transform_0, window_bounds = array<i64: 512, 8>}, {pipeline_mode = #tpu.pipeline_mode<synchronous>, transform_indices = @transform_1, window_bounds = array<i64: 8, 4>}, {pipeline_mode = #tpu.pipeline_mode<synchronous>, transform_indices = @transform_2, window_bounds = array<i64: 1, 4>}, {transform_indices = @transform_3, window_bounds = array<i64: 512, 4>}]} {
    %c0 = arith.constant 0 : index
    %c0_0 = arith.constant 0 : index
    %0 = vector.load %arg1[%c0, %c0_0] : memref<512x8xf32, #tpu.memory_space<vmem>>, vector<512x8xf32>
    %c0_1 = arith.constant 0 : index
    %c0_2 = arith.constant 0 : index
    %1 = vector.load %arg2[%c0_1, %c0_2] : memref<8x4xf32, #tpu.memory_space<vmem>>, vector<8x4xf32>
    %cst = arith.constant dense<0.000000e+00> : vector<512x4xf32>
    %2 = tpu.matmul %0, %1, %cst {dimension_numbers = #tpu.dot_dimension_numbers<[1], [0], [0], [1], [0, 0, 1, 1], [], []>} : vector<512x8xf32>, vector<8x4xf32>, vector<512x4xf32> -> vector<512x4xf32>
    %c0_3 = arith.constant 0 : index
    %c0_4 = arith.constant 0 : index
    %3 = vector.load %arg3[%c0_3, %c0_4] : memref<1x4xf32, #tpu.memory_space<vmem>>, vector<1x4xf32>
    %4 = vector.broadcast %3 : vector<1x4xf32> to vector<512x4xf32>
    %5 = arith.addf %2, %4 : vector<512x4xf32>
    %cst_5 = arith.constant 0.000000e+00 : f32
    %6 = vector.broadcast %cst_5 : f32 to vector<512x4xf32>
    %7 = arith.maximumf %5, %6 : vector<512x4xf32>
    %c0_6 = arith.constant 0 : index
    %c0_7 = arith.constant 0 : index
    %8 = vector.load %arg4[%c0_6, %c0_7] : memref<512x4xf32, #tpu.memory_space<vmem>>, vector<512x4xf32>
    tpu.vector_store %arg4[%c0_6, %c0_7], %7 {strides = array<i32>} : memref<512x4xf32, #tpu.memory_space<vmem>>, vector<512x4xf32>,
    return
  }
  func.func @transform_0(%arg0: i32) -> (i32, i32) {
    %c0_i32 = arith.constant 0 : i32
    %c0_i32_0 = arith.constant 0 : i32
    return %arg0, %c0_i32 : i32, i32
  }
  func.func @transform_1(%arg0: i32) -> (i32, i32) {
    %c0_i32 = arith.constant 0 : i32
    %c0_i32_0 = arith.constant 0 : i32
    %c0_i32_1 = arith.constant 0 : i32
    return %c0_i32, %c0_i32_0 : i32, i32
  }
  func.func @transform_2(%arg0: i32) -> (i32, i32) {
    %c0_i32 = arith.constant 0 : i32
    %c0_i32_0 = arith.constant 0 : i32
    %c0_i32_1 = arith.constant 0 : i32
    return %c0_i32, %c0_i32_0 : i32, i32
  }
  func.func @transform_3(%arg0: i32) -> (i32, i32) {
    %c0_i32 = arith.constant 0 : i32
    %c0_i32_0 = arith.constant 0 : i32
    return %arg0, %c0_i32 : i32, i32
  }
}

</mosaic_0001>

<llo_original>
// kernel: tpu_custom_call.1
$region0: #{tpu_custom_call.1}
  #allocation0 [shape = 'u32[]', space=smem, size = 0x4, offset = 0x4, fixed_abs, tag = 'smem constant byte address 0x4 - core index']
  #allocation1 [shape = 'u32[144,128]{1,0:T(1,128)}', space=vmem, size = 0x12000, scoped, tag = 'internal scratch']
  %s0 = inlined_call_operand.vmem [shape: f32[512,8], index: 0, kind: input, shape index: {}]
  %s1 = inlined_call_operand.vmem [shape: f32[8,4], index: 1, kind: input, shape index: {}]
  %s2 = inlined_call_operand.vmem [shape: f32[1,4], index: 2, kind: input, shape index: {}]
  %s3 = inlined_call_operand.vmem [shape: f32[512,4], index: 3, kind: output, shape index: {}]
  %s4 = sld [smem:[#allocation0]]
  $region22: #{tpu_custom_call.1} parent=0
    _
  %s6 = ssub.s32 1, %s4
  %s7 = scalar_select 0, %s6, %s4
  // Predicated region
  $region2: #{tpu_custom_call.1} parent=0 // pred_check
    _
  $region3: #{tpu_custom_call.1} parent=0 // pred_check_branch
    %9 = sbr.rel (0) target = $region5
  $region4: #{tpu_custom_call.1} parent=0 // pred_region
    _
  $region5: #{tpu_custom_call.1} parent=0 // pred_fallthru
    _
  // Predicated region
  $region6: #{tpu_custom_call.1} parent=0 // pred_check
    _
  $region7: #{tpu_custom_call.1} parent=0 // pred_check_branch
    %11 = sbr.rel (0) target = $region9
  $region8: #{tpu_custom_call.1} parent=0 // pred_region
    _
  $region9: #{tpu_custom_call.1} parent=0 // pred_fallthru
    _
  // Predicated region
  $region10: #{tpu_custom_call.1} parent=0 // pred_check
    _
  $region11: #{tpu_custom_call.1} parent=0 // pred_check_branch
    %13 = sbr.rel (0) target = $region13
  $region12: #{tpu_custom_call.1} parent=0 // pred_region
    _
  $region13: #{tpu_custom_call.1} parent=0 // pred_fallthru
    _
  %v14 = vld [vmem:[%s0] sm:$0xff]
  %v15 = vld [vmem:[%s0 + $0x8] sm:$0xff]
  %v16 = vld [vmem:[%s0 + $0x10] sm:$0xff]
  %v17 = vld [vmem:[%s0 + $0x18] sm:$0xff]
  %v18 = vld [vmem:[%s0 + $0x20] sm:$0xff]
  %v19 = vld [vmem:[%s0 + $0x28] sm:$0xff]
  %v20 = vld [vmem:[%s0 + $0x30] sm:$0xff]
  %v21 = vld [vmem:[%s0 + $0x38] sm:$0xff]
  %v22 = vld [vmem:[%s0 + $0x40] sm:$0xff]
  %v23 = vld [vmem:[%s0 + $0x48] sm:$0xff]
  %v24 = vld [vmem:[%s0 + $0x50] sm:$0xff]
  %v25 = vld [vmem:[%s0 + $0x58] sm:$0xff]
  %v26 = vld [vmem:[%s0 + $0x60] sm:$0xff]
  %v27 = vld [vmem:[%s0 + $0x68] sm:$0xff]
  %v28 = vld [vmem:[%s0 + $0x70] sm:$0xff]
  %v29 = vld [vmem:[%s0 + $0x78] sm:$0xff]
  %v30 = vld [vmem:[%s0 + $0x80] sm:$0xff]
  %v31 = vld [vmem:[%s0 + $0x88] sm:$0xff]
  %v32 = vld [vmem:[%s0 + $0x90] sm:$0xff]
  %v33 = vld [vmem:[%s0 + $0x98] sm:$0xff]
  %v34 = vld [vmem:[%s0 + $0xa0] sm:$0xff]
  %v35 = vld [vmem:[%s0 + $0xa8] sm:$0xff]
  %v36 = vld [vmem:[%s0 + $0xb0] sm:$0xff]
  %v37 = vld [vmem:[%s0 + $0xb8] sm:$0xff]
  %v38 = vld [vmem:[%s0 + $0xc0] sm:$0xff]
  %v39 = vld [vmem:[%s0 + $0xc8] sm:$0xff]
  %v40 = vld [vmem:[%s0 + $0xd0] sm:$0xff]
  %v41 = vld [vmem:[%s0 + $0xd8] sm:$0xff]
  %v42 = vld [vmem:[%s0 + $0xe0] sm:$0xff]
  %v43 = vld [vmem:[%s0 + $0xe8] sm:$0xff]
  %v44 = vld [vmem:[%s0 + $0xf0] sm:$0xff]
  %v45 = vld [vmem:[%s0 + $0xf8] sm:$0xff]
  %v46 = vld [vmem:[%s0 + $0x100] sm:$0xff]
  %v47 = vld [vmem:[%s0 + $0x108] sm:$0xff]
  %v48 = vld [vmem:[%s0 + $0x110] sm:$0xff]
  %v49 = vld [vmem:[%s0 + $0x118] sm:$0xff]
  %v50 = vld [vmem:[%s0 + $0x120] sm:$0xff]
  %v51 = vld [vmem:[%s0 + $0x128] sm:$0xff]
  %v52 = vld [vmem:[%s0 + $0x130] sm:$0xff]
  %v53 = vld [vmem:[%s0 + $0x138] sm:$0xff]
  %v54 = vld [vmem:[%s0 + $0x140] sm:$0xff]
  %v55 = vld [vmem:[%s0 + $0x148] sm:$0xff]
  %v56 = vld [vmem:[%s0 + $0x150] sm:$0xff]
  %v57 = vld [vmem:[%s0 + $0x158] sm:$0xff]
  %v58 = vld [vmem:[%s0 + $0x160] sm:$0xff]
  %v59 = vld [vmem:[%s0 + $0x168] sm:$0xff]
  %v60 = vld [vmem:[%s0 + $0x170] sm:$0xff]
  %v61 = vld [vmem:[%s0 + $0x178] sm:$0xff]
  %v62 = vld [vmem:[%s0 + $0x180] sm:$0xff]
  %v63 = vld [vmem:[%s0 + $0x188] sm:$0xff]
  %v64 = vld [vmem:[%s0 + $0x190] sm:$0xff]
  %v65 = vld [vmem:[%s0 + $0x198] sm:$0xff]
  %v66 = vld [vmem:[%s0 + $0x1a0] sm:$0xff]
  %v67 = vld [vmem:[%s0 + $0x1a8] sm:$0xff]
  %v68 = vld [vmem:[%s0 + $0x1b0] sm:$0xff]
  %v69 = vld [vmem:[%s0 + $0x1b8] sm:$0xff]
  %v70 = vld [vmem:[%s0 + $0x1c0] sm:$0xff]
  %v71 = vld [vmem:[%s0 + $0x1c8] sm:$0xff]
  %v72 = vld [vmem:[%s0 + $0x1d0] sm:$0xff]
  %v73 = vld [vmem:[%s0 + $0x1d8] sm:$0xff]
  %v74 = vld [vmem:[%s0 + $0x1e0] sm:$0xff]
  %v75 = vld [vmem:[%s0 + $0x1e8] sm:$0xff]
  %v76 = vld [vmem:[%s0 + $0x1f0] sm:$0xff]
  %v77 = vld [vmem:[%s0 + $0x1f8] sm:$0xff]
  %v78 = vld [vmem:[%s1] sm:$0xff]
  %v79 = vld [vmem:[%s2] sm:$0x1]
  %v81 = vlaneseq
  %v82 = vshrl.u32 %v81, 7
  %v83 = vsub.s32 0, %v82
  %v84 = vrot.slane %v79, %v83
  %vm86 = vcmask 64512
  %v88 = vsel %vm86, %v14, 0
  %v91 = vsel %vm86, %v15, 0
  %v94 = vsel %vm86, %v16, 0
  %v97 = vsel %vm86, %v17, 0
  %v100 = vsel %vm86, %v18, 0
  %v103 = vsel %vm86, %v19, 0
  %v106 = vsel %vm86, %v20, 0
  %v109 = vsel %vm86, %v21, 0
  %v112 = vsel %vm86, %v22, 0
  %v115 = vsel %vm86, %v23, 0
  %v118 = vsel %vm86, %v24, 0
  %v121 = vsel %vm86, %v25, 0
  %v124 = vsel %vm86, %v26, 0
  %v127 = vsel %vm86, %v27, 0
  %v130 = vsel %vm86, %v28, 0
  %v133 = vsel %vm86, %v29, 0
  %v136 = vsel %vm86, %v30, 0
  %v139 = vsel %vm86, %v31, 0
  %v142 = vsel %vm86, %v32, 0
  %v145 = vsel %vm86, %v33, 0
  %v148 = vsel %vm86, %v34, 0
  %v151 = vsel %vm86, %v35, 0
  %v154 = vsel %vm86, %v36, 0
  %v157 = vsel %vm86, %v37, 0
  %v160 = vsel %vm86, %v38, 0
  %v163 = vsel %vm86, %v39, 0
  %v166 = vsel %vm86, %v40, 0
  %v169 = vsel %vm86, %v41, 0
  %v172 = vsel %vm86, %v42, 0
  %v175 = vsel %vm86, %v43, 0
  %v178 = vsel %vm86, %v44, 0
  %v181 = vsel %vm86, %v45, 0
  %v184 = vsel %vm86, %v46, 0
  %v187 = vsel %vm86, %v47, 0
  %v190 = vsel %vm86, %v48, 0
  %v193 = vsel %vm86, %v49, 0
  %v196 = vsel %vm86, %v50, 0
  %v199 = vsel %vm86, %v51, 0
  %v202 = vsel %vm86, %v52, 0
  %v205 = vsel %vm86, %v53, 0
  %v208 = vsel %vm86, %v54, 0
  %v211 = vsel %vm86, %v55, 0
  %v214 = vsel %vm86, %v56, 0
  %v217 = vsel %vm86, %v57, 0
  %v220 = vsel %vm86, %v58, 0
  %v223 = vsel %vm86, %v59, 0
  %v226 = vsel %vm86, %v60, 0
  %v229 = vsel %vm86, %v61, 0
  %v232 = vsel %vm86, %v62, 0
  %v235 = vsel %vm86, %v63, 0
  %v238 = vsel %vm86, %v64, 0
  %v241 = vsel %vm86, %v65, 0
  %v244 = vsel %vm86, %v66, 0
  %v247 = vsel %vm86, %v67, 0
  %v250 = vsel %vm86, %v68, 0
  %v253 = vsel %vm86, %v69, 0
  %v256 = vsel %vm86, %v70, 0
  %v259 = vsel %vm86, %v71, 0
  %v262 = vsel %vm86, %v72, 0
  %v265 = vsel %vm86, %v73, 0
  %v268 = vsel %vm86, %v74, 0
  %v271 = vsel %vm86, %v75, 0
  %v274 = vsel %vm86, %v76, 0
  %v277 = vsel %vm86, %v77, 0
  %279 = vmatprep.subr.mxu0 0.0
  %280 = vmatpush1.msra.mxu0 0.0
  %281 = vmatprep.subr.mxu0 0.0
  %282 = vmatpush1.msra.mxu0 0.0
  %283 = vmatprep.subr.mxu0 0.0
  %284 = vmatpush1.msra.mxu0 0.0
  %285 = vmatprep.subr.mxu0 0.0
  %286 = vmatpush1.msra.mxu0 0.0
  %287 = vmatprep.subr.mxu0 0.0
  %288 = vmatpush1.msra.mxu0 0.0
  %289 = vmatprep.subr.mxu0 0.0
  %290 = vmatpush1.msra.mxu0 0.0
  %291 = vmatprep.subr.mxu0 0.0
  %292 = vmatpush1.msra.mxu0 0.0
  %293 = vmatprep.subr.mxu0 0.0
  %294 = vmatpush1.msra.mxu0 0.0
  %295 = vmatprep.subr.mxu0 0.0
  %296 = vmatpush1.msra.mxu0 0.0
  %297 = vmatprep.subr.mxu0 0.0
  %298 = vmatpush1.msra.mxu0 0.0
  %299 = vmatprep.subr.mxu0 0.0
  %300 = vmatpush1.msra.mxu0 0.0
  %301 = vmatprep.subr.mxu0 0.0
  %302 = vmatpush1.msra.mxu0 0.0
  %303 = vmatprep.subr.mxu0 0.0
  %304 = vmatpush1.msra.mxu0 0.0
  %305 = vmatprep.subr.mxu0 0.0
  %306 = vmatpush1.msra.mxu0 0.0
  %307 = vmatprep.subr.mxu0 0.0
  %308 = vmatpush1.msra.mxu0 0.0
  %309 = vmatprep.subr.mxu0 0.0
  %310 = vmatpush1.msra.mxu0 %v78
  %311 = vmatprep.subr.mxu0 0.0
  %312 = vmatpush2.msra.mxu0 0.0
  %313 = vmatprep.subr.mxu0 0.0
  %314 = vmatpush2.msra.mxu0 0.0
  %315 = vmatprep.subr.mxu0 0.0
  %316 = vmatpush2.msra.mxu0 0.0
  %317 = vmatprep.subr.mxu0 0.0
  %318 = vmatpush2.msra.mxu0 0.0
  %319 = vmatprep.subr.mxu0 0.0
  %320 = vmatpush2.msra.mxu0 0.0
  %321 = vmatprep.subr.mxu0 0.0
  %322 = vmatpush2.msra.mxu0 0.0
  %323 = vmatprep.subr.mxu0 0.0
  %324 = vmatpush2.msra.mxu0 0.0
  %325 = vmatprep.subr.mxu0 0.0
  %326 = vmatpush2.msra.mxu0 0.0
  %327 = vmatprep.subr.mxu0 0.0
  %328 = vmatpush2.msra.mxu0 0.0
  %329 = vmatprep.subr.mxu0 0.0
  %330 = vmatpush2.msra.mxu0 0.0
  %331 = vmatprep.subr.mxu0 0.0
  %332 = vmatpush2.msra.mxu0 0.0
  %333 = vmatprep.subr.mxu0 0.0
  %334 = vmatpush2.msra.mxu0 0.0
  %335 = vmatprep.subr.mxu0 0.0
  %336 = vmatpush2.msra.mxu0 0.0
  %337 = vmatprep.subr.mxu0 0.0
  %338 = vmatpush2.msra.mxu0 0.0
  %339 = vmatprep.subr.mxu0 0.0
  %340 = vmatpush2.msra.mxu0 0.0
  %341 = vmatprep.subr.mxu0 0.0
  %342 = vmatpush2.msra.mxu0 0.0
  %343 = vmatprep.mubr.f32.mxu0 0.0
  %344 = vmatmul.mubr.f32.gmra.mxu0 %v88
  %v345 = vpop.f32.mrf.mxu0
  %v346 = vadd.f32 %v84, %v345
  %v347 = vpop.f32.mrf.mxu0
  %348 = vmatprep.mubr.f32.mxu0 0.0
  %349 = vmatmul.mubr.f32.gmra.mxu0 %v91
  %v350 = vpop.f32.mrf.mxu0
  %v351 = vadd.f32 %v84, %v350
  %v352 = vpop.f32.mrf.mxu0
  %353 = vmatprep.mubr.f32.mxu0 0.0
  %354 = vmatmul.mubr.f32.gmra.mxu0 %v94
  %v355 = vpop.f32.mrf.mxu0
  %v356 = vadd.f32 %v84, %v355
  %v357 = vpop.f32.mrf.mxu0
  %358 = vmatprep.mubr.f32.mxu0 0.0
  %359 = vmatmul.mubr.f32.gmra.mxu0 %v97
  %v360 = vpop.f32.mrf.mxu0
  %v361 = vadd.f32 %v84, %v360
  %v362 = vpop.f32.mrf.mxu0
  %363 = vmatprep.mubr.f32.mxu0 0.0
  %364 = vmatmul.mubr.f32.gmra.mxu0 %v100
  %v365 = vpop.f32.mrf.mxu0
  %v366 = vadd.f32 %v84, %v365
  %v367 = vpop.f32.mrf.mxu0
  %368 = vmatprep.mubr.f32.mxu0 0.0
  %369 = vmatmul.mubr.f32.gmra.mxu0 %v103
  %v370 = vpop.f32.mrf.mxu0
  %v371 = vadd.f32 %v84, %v370
  %v372 = vpop.f32.mrf.mxu0
  %373 = vmatprep.mubr.f32.mxu0 0.0
  %374 = vmatmul.mubr.f32.gmra.mxu0 %v106
  %v375 = vpop.f32.mrf.mxu0
  %v376 = vadd.f32 %v84, %v375
  %v377 = vpop.f32.mrf.mxu0
  %378 = vmatprep.mubr.f32.mxu0 0.0
  %379 = vmatmul.mubr.f32.gmra.mxu0 %v109
  %v380 = vpop.f32.mrf.mxu0
  %v381 = vadd.f32 %v84, %v380
  %v382 = vpop.f32.mrf.mxu0
  %383 = vmatprep.mubr.f32.mxu0 0.0
  %384 = vmatmul.mubr.f32.gmra.mxu0 %v112
  %v385 = vpop.f32.mrf.mxu0
  %v386 = vadd.f32 %v84, %v385
  %v387 = vpop.f32.mrf.mxu0
  %388 = vmatprep.mubr.f32.mxu0 0.0
  %389 = vmatmul.mubr.f32.gmra.mxu0 %v115
  %v390 = vpop.f32.mrf.mxu0
  %v391 = vadd.f32 %v84, %v390
  %v392 = vpop.f32.mrf.mxu0
  %393 = vmatprep.mubr.f32.mxu0 0.0
  %394 = vmatmul.mubr.f32.gmra.mxu0 %v118
  %v395 = vpop.f32.mrf.mxu0
  %v396 = vadd.f32 %v84, %v395
  %v397 = vpop.f32.mrf.mxu0
  %398 = vmatprep.mubr.f32.mxu0 0.0
  %399 = vmatmul.mubr.f32.gmra.mxu0 %v121
  %v400 = vpop.f32.mrf.mxu0
  %v401 = vadd.f32 %v84, %v400
  %v402 = vpop.f32.mrf.mxu0
  %403 = vmatprep.mubr.f32.mxu0 0.0
  %404 = vmatmul.mubr.f32.gmra.mxu0 %v124
  %v405 = vpop.f32.mrf.mxu0
  %v406 = vadd.f32 %v84, %v405
  %v407 = vpop.f32.mrf.mxu0
  %408 = vmatprep.mubr.f32.mxu0 0.0
  %409 = vmatmul.mubr.f32.gmra.mxu0 %v127
  %v410 = vpop.f32.mrf.mxu0
  %v411 = vadd.f32 %v84, %v410
  %v412 = vpop.f32.mrf.mxu0
  %413 = vmatprep.mubr.f32.mxu0 0.0
  %414 = vmatmul.mubr.f32.gmra.mxu0 %v130
  %v415 = vpop.f32.mrf.mxu0
  %v416 = vadd.f32 %v84, %v415
  %v417 = vpop.f32.mrf.mxu0
  %418 = vmatprep.mubr.f32.mxu0 0.0
  %419 = vmatmul.mubr.f32.gmra.mxu0 %v133
  %v420 = vpop.f32.mrf.mxu0
  %v421 = vadd.f32 %v84, %v420
  %v422 = vpop.f32.mrf.mxu0
  %423 = vmatprep.mubr.f32.mxu0 0.0
  %424 = vmatmul.mubr.f32.gmra.mxu0 %v136
  %v425 = vpop.f32.mrf.mxu0
  %v426 = vadd.f32 %v84, %v425
  %v427 = vpop.f32.mrf.mxu0
  %428 = vmatprep.mubr.f32.mxu0 0.0
  %429 = vmatmul.mubr.f32.gmra.mxu0 %v139
  %v430 = vpop.f32.mrf.mxu0
  %v431 = vadd.f32 %v84, %v430
  %v432 = vpop.f32.mrf.mxu0
  %433 = vmatprep.mubr.f32.mxu0 0.0
  %434 = vmatmul.mubr.f32.gmra.mxu0 %v142
  %v435 = vpop.f32.mrf.mxu0
  %v436 = vadd.f32 %v84, %v435
  %v437 = vpop.f32.mrf.mxu0
  %438 = vmatprep.mubr.f32.mxu0 0.0
  %439 = vmatmul.mubr.f32.gmra.mxu0 %v145
  %v440 = vpop.f32.mrf.mxu0
  %v441 = vadd.f32 %v84, %v440
  %v442 = vpop.f32.mrf.mxu0
  %443 = vmatprep.mubr.f32.mxu0 0.0
  %444 = vmatmul.mubr.f32.gmra.mxu0 %v148
  %v445 = vpop.f32.mrf.mxu0
  %v446 = vadd.f32 %v84, %v445
  %v447 = vpop.f32.mrf.mxu0
  %448 = vmatprep.mubr.f32.mxu0 0.0
  %449 = vmatmul.mubr.f32.gmra.mxu0 %v151
  %v450 = vpop.f32.mrf.mxu0
  %v451 = vadd.f32 %v84, %v450
  %v452 = vpop.f32.mrf.mxu0
  %453 = vmatprep.mubr.f32.mxu0 0.0
  %454 = vmatmul.mubr.f32.gmra.mxu0 %v154
  %v455 = vpop.f32.mrf.mxu0
  %v456 = vadd.f32 %v84, %v455
  %v457 = vpop.f32.mrf.mxu0
  %458 = vmatprep.mubr.f32.mxu0 0.0
  %459 = vmatmul.mubr.f32.gmra.mxu0 %v157
  %v460 = vpop.f32.mrf.mxu0
  %v461 = vadd.f32 %v84, %v460
  %v462 = vpop.f32.mrf.mxu0
  %463 = vmatprep.mubr.f32.mxu0 0.0
  %464 = vmatmul.mubr.f32.gmra.mxu0 %v160
  %v465 = vpop.f32.mrf.mxu0
  %v466 = vadd.f32 %v84, %v465
  %v467 = vpop.f32.mrf.mxu0
  %468 = vmatprep.mubr.f32.mxu0 0.0
  %469 = vmatmul.mubr.f32.gmra.mxu0 %v163
  %v470 = vpop.f32.mrf.mxu0
  %v471 = vadd.f32 %v84, %v470
  %v472 = vpop.f32.mrf.mxu0
  %473 = vmatprep.mubr.f32.mxu0 0.0
  %474 = vmatmul.mubr.f32.gmra.mxu0 %v166
  %v475 = vpop.f32.mrf.mxu0
  %v476 = vadd.f32 %v84, %v475
  %v477 = vpop.f32.mrf.mxu0
  %478 = vmatprep.mubr.f32.mxu0 0.0
  %479 = vmatmul.mubr.f32.gmra.mxu0 %v169
  %v480 = vpop.f32.mrf.mxu0
  %v481 = vadd.f32 %v84, %v480
  %v482 = vpop.f32.mrf.mxu0
  %483 = vmatprep.mubr.f32.mxu0 0.0
  %484 = vmatmul.mubr.f32.gmra.mxu0 %v172
  %v485 = vpop.f32.mrf.mxu0
  %v486 = vadd.f32 %v84, %v485
  %v487 = vpop.f32.mrf.mxu0
  %488 = vmatprep.mubr.f32.mxu0 0.0
  %489 = vmatmul.mubr.f32.gmra.mxu0 %v175
  %v490 = vpop.f32.mrf.mxu0
  %v491 = vadd.f32 %v84, %v490
  %v492 = vpop.f32.mrf.mxu0
  %493 = vmatprep.mubr.f32.mxu0 0.0
  %494 = vmatmul.mubr.f32.gmra.mxu0 %v178
  %v495 = vpop.f32.mrf.mxu0
  %v496 = vadd.f32 %v84, %v495
  %v497 = vpop.f32.mrf.mxu0
  %498 = vmatprep.mubr.f32.mxu0 0.0
  %499 = vmatmul.mubr.f32.gmra.mxu0 %v181
  %v500 = vpop.f32.mrf.mxu0
  %v501 = vadd.f32 %v84, %v500
  %v502 = vpop.f32.mrf.mxu0
  %503 = vmatprep.mubr.f32.mxu0 0.0
  %504 = vmatmul.mubr.f32.gmra.mxu0 %v184
  %v505 = vpop.f32.mrf.mxu0
  %v506 = vadd.f32 %v84, %v505
  %v507 = vpop.f32.mrf.mxu0
  %508 = vmatprep.mubr.f32.mxu0 0.0
  %509 = vmatmul.mubr.f32.gmra.mxu0 %v187
  %v510 = vpop.f32.mrf.mxu0
  %v511 = vadd.f32 %v84, %v510
  %v512 = vpop.f32.mrf.mxu0
  %513 = vmatprep.mubr.f32.mxu0 0.0
  %514 = vmatmul.mubr.f32.gmra.mxu0 %v190
  %v515 = vpop.f32.mrf.mxu0
  %v516 = vadd.f32 %v84, %v515
  %v517 = vpop.f32.mrf.mxu0
  %518 = vmatprep.mubr.f32.mxu0 0.0
  %519 = vmatmul.mubr.f32.gmra.mxu0 %v193
  %v520 = vpop.f32.mrf.mxu0
  %v521 = vadd.f32 %v84, %v520
  %v522 = vpop.f32.mrf.mxu0
  %523 = vmatprep.mubr.f32.mxu0 0.0
  %524 = vmatmul.mubr.f32.gmra.mxu0 %v196
  %v525 = vpop.f32.mrf.mxu0
  %v526 = vadd.f32 %v84, %v525
  %v527 = vpop.f32.mrf.mxu0
  %528 = vmatprep.mubr.f32.mxu0 0.0
  %529 = vmatmul.mubr.f32.gmra.mxu0 %v199
  %v530 = vpop.f32.mrf.mxu0
  %v531 = vadd.f32 %v84, %v530
  %v532 = vpop.f32.mrf.mxu0
  %533 = vmatprep.mubr.f32.mxu0 0.0
  %534 = vmatmul.mubr.f32.gmra.mxu0 %v202
  %v535 = vpop.f32.mrf.mxu0
  %v536 = vadd.f32 %v84, %v535
  %v537 = vpop.f32.mrf.mxu0
  %538 = vmatprep.mubr.f32.mxu0 0.0
  %539 = vmatmul.mubr.f32.gmra.mxu0 %v205
  %v540 = vpop.f32.mrf.mxu0
  %v541 = vadd.f32 %v84, %v540
  %v542 = vpop.f32.mrf.mxu0
  %543 = vmatprep.mubr.f32.mxu0 0.0
  %544 = vmatmul.mubr.f32.gmra.mxu0 %v208
  %v545 = vpop.f32.mrf.mxu0
  %v546 = vadd.f32 %v84, %v545
  %v547 = vpop.f32.mrf.mxu0
  %548 = vmatprep.mubr.f32.mxu0 0.0
  %549 = vmatmul.mubr.f32.gmra.mxu0 %v211
  %v550 = vpop.f32.mrf.mxu0
  %v551 = vadd.f32 %v84, %v550
  %v552 = vpop.f32.mrf.mxu0
  %553 = vmatprep.mubr.f32.mxu0 0.0
  %554 = vmatmul.mubr.f32.gmra.mxu0 %v214
  %v555 = vpop.f32.mrf.mxu0
  %v556 = vadd.f32 %v84, %v555
  %v557 = vpop.f32.mrf.mxu0
  %558 = vmatprep.mubr.f32.mxu0 0.0
  %559 = vmatmul.mubr.f32.gmra.mxu0 %v217
  %v560 = vpop.f32.mrf.mxu0
  %v561 = vadd.f32 %v84, %v560
  %v562 = vpop.f32.mrf.mxu0
  %563 = vmatprep.mubr.f32.mxu0 0.0
  %564 = vmatmul.mubr.f32.gmra.mxu0 %v220
  %v565 = vpop.f32.mrf.mxu0
  %v566 = vadd.f32 %v84, %v565
  %v567 = vpop.f32.mrf.mxu0
  %568 = vmatprep.mubr.f32.mxu0 0.0
  %569 = vmatmul.mubr.f32.gmra.mxu0 %v223
  %v570 = vpop.f32.mrf.mxu0
  %v571 = vadd.f32 %v84, %v570
  %v572 = vpop.f32.mrf.mxu0
  %573 = vmatprep.mubr.f32.mxu0 0.0
  %574 = vmatmul.mubr.f32.gmra.mxu0 %v226
  %v575 = vpop.f32.mrf.mxu0
  %v576 = vadd.f32 %v84, %v575
  %v577 = vpop.f32.mrf.mxu0
  %578 = vmatprep.mubr.f32.mxu0 0.0
  %579 = vmatmul.mubr.f32.gmra.mxu0 %v229
  %v580 = vpop.f32.mrf.mxu0
  %v581 = vadd.f32 %v84, %v580
  %v582 = vpop.f32.mrf.mxu0
  %583 = vmatprep.mubr.f32.mxu0 0.0
  %584 = vmatmul.mubr.f32.gmra.mxu0 %v232
  %v585 = vpop.f32.mrf.mxu0
  %v586 = vadd.f32 %v84, %v585
  %v587 = vpop.f32.mrf.mxu0
  %588 = vmatprep.mubr.f32.mxu0 0.0
  %589 = vmatmul.mubr.f32.gmra.mxu0 %v235
  %v590 = vpop.f32.mrf.mxu0
  %v591 = vadd.f32 %v84, %v590
  %v592 = vpop.f32.mrf.mxu0
  %593 = vmatprep.mubr.f32.mxu0 0.0
  %594 = vmatmul.mubr.f32.gmra.mxu0 %v238
  %v595 = vpop.f32.mrf.mxu0
  %v596 = vadd.f32 %v84, %v595
  %v597 = vpop.f32.mrf.mxu0
  %598 = vmatprep.mubr.f32.mxu0 0.0
  %599 = vmatmul.mubr.f32.gmra.mxu0 %v241
  %v600 = vpop.f32.mrf.mxu0
  %v601 = vadd.f32 %v84, %v600
  %v602 = vpop.f32.mrf.mxu0
  %603 = vmatprep.mubr.f32.mxu0 0.0
  %604 = vmatmul.mubr.f32.gmra.mxu0 %v244
  %v605 = vpop.f32.mrf.mxu0
  %v606 = vadd.f32 %v84, %v605
  %v607 = vpop.f32.mrf.mxu0
  %608 = vmatprep.mubr.f32.mxu0 0.0
  %609 = vmatmul.mubr.f32.gmra.mxu0 %v247
  %v610 = vpop.f32.mrf.mxu0
  %v611 = vadd.f32 %v84, %v610
  %v612 = vpop.f32.mrf.mxu0
  %613 = vmatprep.mubr.f32.mxu0 0.0
  %614 = vmatmul.mubr.f32.gmra.mxu0 %v250
  %v615 = vpop.f32.mrf.mxu0
  %v616 = vadd.f32 %v84, %v615
  %v617 = vpop.f32.mrf.mxu0
  %618 = vmatprep.mubr.f32.mxu0 0.0
  %619 = vmatmul.mubr.f32.gmra.mxu0 %v253
  %v620 = vpop.f32.mrf.mxu0
  %v621 = vadd.f32 %v84, %v620
  %v622 = vpop.f32.mrf.mxu0
  %623 = vmatprep.mubr.f32.mxu0 0.0
  %624 = vmatmul.mubr.f32.gmra.mxu0 %v256
  %v625 = vpop.f32.mrf.mxu0
  %v626 = vadd.f32 %v84, %v625
  %v627 = vpop.f32.mrf.mxu0
  %628 = vmatprep.mubr.f32.mxu0 0.0
  %629 = vmatmul.mubr.f32.gmra.mxu0 %v259
  %v630 = vpop.f32.mrf.mxu0
  %v631 = vadd.f32 %v84, %v630
  %v632 = vpop.f32.mrf.mxu0
  %633 = vmatprep.mubr.f32.mxu0 0.0
  %634 = vmatmul.mubr.f32.gmra.mxu0 %v262
  %v635 = vpop.f32.mrf.mxu0
  %v636 = vadd.f32 %v84, %v635
  %v637 = vpop.f32.mrf.mxu0
  %638 = vmatprep.mubr.f32.mxu0 0.0
  %639 = vmatmul.mubr.f32.gmra.mxu0 %v265
  %v640 = vpop.f32.mrf.mxu0
  %v641 = vadd.f32 %v84, %v640
  %v642 = vpop.f32.mrf.mxu0
  %643 = vmatprep.mubr.f32.mxu0 0.0
  %644 = vmatmul.mubr.f32.gmra.mxu0 %v268
  %v645 = vpop.f32.mrf.mxu0
  %v646 = vadd.f32 %v84, %v645
  %v647 = vpop.f32.mrf.mxu0
  %648 = vmatprep.mubr.f32.mxu0 0.0
  %649 = vmatmul.mubr.f32.gmra.mxu0 %v271
  %v650 = vpop.f32.mrf.mxu0
  %v651 = vadd.f32 %v84, %v650
  %v652 = vpop.f32.mrf.mxu0
  %653 = vmatprep.mubr.f32.mxu0 0.0
  %654 = vmatmul.mubr.f32.gmra.mxu0 %v274
  %v655 = vpop.f32.mrf.mxu0
  %v656 = vadd.f32 %v84, %v655
  %v657 = vpop.f32.mrf.mxu0
  %658 = vmatprep.mubr.f32.mxu0 0.0
  %659 = vmatmul.mubr.f32.gmra.mxu0 %v277
  %v660 = vpop.f32.mrf.mxu0
  %v661 = vadd.f32 %v84, %v660
  %v662 = vpop.f32.mrf.mxu0
  %663 = vdwg.mxu0
  %v664 = vmax.f32 %v346, 0.0
  %v665 = vmax.f32 %v351, 0.0
  %v666 = vmax.f32 %v356, 0.0
  %v667 = vmax.f32 %v361, 0.0
  %v668 = vmax.f32 %v366, 0.0
  %v669 = vmax.f32 %v371, 0.0
  %v670 = vmax.f32 %v376, 0.0
  %v671 = vmax.f32 %v381, 0.0
  %v672 = vmax.f32 %v386, 0.0
  %v673 = vmax.f32 %v391, 0.0
  %v674 = vmax.f32 %v396, 0.0
  %v675 = vmax.f32 %v401, 0.0
  %v676 = vmax.f32 %v406, 0.0
  %v677 = vmax.f32 %v411, 0.0
  %v678 = vmax.f32 %v416, 0.0
  %v679 = vmax.f32 %v421, 0.0
  %v680 = vmax.f32 %v426, 0.0
  %v681 = vmax.f32 %v431, 0.0
  %v682 = vmax.f32 %v436, 0.0
  %v683 = vmax.f32 %v441, 0.0
  %v684 = vmax.f32 %v446, 0.0
  %v685 = vmax.f32 %v451, 0.0
  %v686 = vmax.f32 %v456, 0.0
  %v687 = vmax.f32 %v461, 0.0
  %v688 = vmax.f32 %v466, 0.0
  %v689 = vmax.f32 %v471, 0.0
  %v690 = vmax.f32 %v476, 0.0
  %v691 = vmax.f32 %v481, 0.0
  %v692 = vmax.f32 %v486, 0.0
  %v693 = vmax.f32 %v491, 0.0
  %v694 = vmax.f32 %v496, 0.0
  %v695 = vmax.f32 %v501, 0.0
  %v696 = vmax.f32 %v506, 0.0
  %v697 = vmax.f32 %v511, 0.0
  %v698 = vmax.f32 %v516, 0.0
  %v699 = vmax.f32 %v521, 0.0
  %v700 = vmax.f32 %v526, 0.0
  %v701 = vmax.f32 %v531, 0.0
  %v702 = vmax.f32 %v536, 0.0
  %v703 = vmax.f32 %v541, 0.0
  %v704 = vmax.f32 %v546, 0.0
  %v705 = vmax.f32 %v551, 0.0
  %v706 = vmax.f32 %v556, 0.0
  %v707 = vmax.f32 %v561, 0.0
  %v708 = vmax.f32 %v566, 0.0
  %v709 = vmax.f32 %v571, 0.0
  %v710 = vmax.f32 %v576, 0.0
  %v711 = vmax.f32 %v581, 0.0
  %v712 = vmax.f32 %v586, 0.0
  %v713 = vmax.f32 %v591, 0.0
  %v714 = vmax.f32 %v596, 0.0
  %v715 = vmax.f32 %v601, 0.0
  %v716 = vmax.f32 %v606, 0.0
  %v717 = vmax.f32 %v611, 0.0
  %v718 = vmax.f32 %v616, 0.0
  %v719 = vmax.f32 %v621, 0.0
  %v720 = vmax.f32 %v626, 0.0
  %v721 = vmax.f32 %v631, 0.0
  %v722 = vmax.f32 %v636, 0.0
  %v723 = vmax.f32 %v641, 0.0
  %v724 = vmax.f32 %v646, 0.0
  %v725 = vmax.f32 %v651, 0.0
  %v726 = vmax.f32 %v656, 0.0
  %v727 = vmax.f32 %v661, 0.0
  %vm728 = vcmask 31744
  %729 = vst.msk [vmem:[%s3] sm:$0xff] %vm728, %v664
  %730 = vst.msk [vmem:[%s3 + $0x8] sm:$0xff] %vm728, %v665
  %731 = vst.msk [vmem:[%s3 + $0x10] sm:$0xff] %vm728, %v666
  %732 = vst.msk [vmem:[%s3 + $0x18] sm:$0xff] %vm728, %v667
  %733 = vst.msk [vmem:[%s3 + $0x20] sm:$0xff] %vm728, %v668
  %734 = vst.msk [vmem:[%s3 + $0x28] sm:$0xff] %vm728, %v669
  %735 = vst.msk [vmem:[%s3 + $0x30] sm:$0xff] %vm728, %v670
  %736 = vst.msk [vmem:[%s3 + $0x38] sm:$0xff] %vm728, %v671
  %737 = vst.msk [vmem:[%s3 + $0x40] sm:$0xff] %vm728, %v672
  %738 = vst.msk [vmem:[%s3 + $0x48] sm:$0xff] %vm728, %v673
  %739 = vst.msk [vmem:[%s3 + $0x50] sm:$0xff] %vm728, %v674
  %740 = vst.msk [vmem:[%s3 + $0x58] sm:$0xff] %vm728, %v675
  %741 = vst.msk [vmem:[%s3 + $0x60] sm:$0xff] %vm728, %v676
  %742 = vst.msk [vmem:[%s3 + $0x68] sm:$0xff] %vm728, %v677
  %743 = vst.msk [vmem:[%s3 + $0x70] sm:$0xff] %vm728, %v678
  %744 = vst.msk [vmem:[%s3 + $0x78] sm:$0xff] %vm728, %v679
  %745 = vst.msk [vmem:[%s3 + $0x80] sm:$0xff] %vm728, %v680
  %746 = vst.msk [vmem:[%s3 + $0x88] sm:$0xff] %vm728, %v681
  %747 = vst.msk [vmem:[%s3 + $0x90] sm:$0xff] %vm728, %v682
  %748 = vst.msk [vmem:[%s3 + $0x98] sm:$0xff] %vm728, %v683
  %749 = vst.msk [vmem:[%s3 + $0xa0] sm:$0xff] %vm728, %v684
  %750 = vst.msk [vmem:[%s3 + $0xa8] sm:$0xff] %vm728, %v685
  %751 = vst.msk [vmem:[%s3 + $0xb0] sm:$0xff] %vm728, %v686
  %752 = vst.msk [vmem:[%s3 + $0xb8] sm:$0xff] %vm728, %v687
  %753 = vst.msk [vmem:[%s3 + $0xc0] sm:$0xff] %vm728, %v688
  %754 = vst.msk [vmem:[%s3 + $0xc8] sm:$0xff] %vm728, %v689
  %755 = vst.msk [vmem:[%s3 + $0xd0] sm:$0xff] %vm728, %v690
  %756 = vst.msk [vmem:[%s3 + $0xd8] sm:$0xff] %vm728, %v691
  %757 = vst.msk [vmem:[%s3 + $0xe0] sm:$0xff] %vm728, %v692
  %758 = vst.msk [vmem:[%s3 + $0xe8] sm:$0xff] %vm728, %v693
  %759 = vst.msk [vmem:[%s3 + $0xf0] sm:$0xff] %vm728, %v694
  %760 = vst.msk [vmem:[%s3 + $0xf8] sm:$0xff] %vm728, %v695
  %761 = vst.msk [vmem:[%s3 + $0x100] sm:$0xff] %vm728, %v696
  %762 = vst.msk [vmem:[%s3 + $0x108] sm:$0xff] %vm728, %v697
  %763 = vst.msk [vmem:[%s3 + $0x110] sm:$0xff] %vm728, %v698
  %764 = vst.msk [vmem:[%s3 + $0x118] sm:$0xff] %vm728, %v699
  %765 = vst.msk [vmem:[%s3 + $0x120] sm:$0xff] %vm728, %v700
  %766 = vst.msk [vmem:[%s3 + $0x128] sm:$0xff] %vm728, %v701
  %767 = vst.msk [vmem:[%s3 + $0x130] sm:$0xff] %vm728, %v702
  %768 = vst.msk [vmem:[%s3 + $0x138] sm:$0xff] %vm728, %v703
  %769 = vst.msk [vmem:[%s3 + $0x140] sm:$0xff] %vm728, %v704
  %770 = vst.msk [vmem:[%s3 + $0x148] sm:$0xff] %vm728, %v705
  %771 = vst.msk [vmem:[%s3 + $0x150] sm:$0xff] %vm728, %v706
  %772 = vst.msk [vmem:[%s3 + $0x158] sm:$0xff] %vm728, %v707
  %773 = vst.msk [vmem:[%s3 + $0x160] sm:$0xff] %vm728, %v708
  %774 = vst.msk [vmem:[%s3 + $0x168] sm:$0xff] %vm728, %v709
  %775 = vst.msk [vmem:[%s3 + $0x170] sm:$0xff] %vm728, %v710
  %776 = vst.msk [vmem:[%s3 + $0x178] sm:$0xff] %vm728, %v711
  %777 = vst.msk [vmem:[%s3 + $0x180] sm:$0xff] %vm728, %v712
  %778 = vst.msk [vmem:[%s3 + $0x188] sm:$0xff] %vm728, %v713
  %779 = vst.msk [vmem:[%s3 + $0x190] sm:$0xff] %vm728, %v714
  %780 = vst.msk [vmem:[%s3 + $0x198] sm:$0xff] %vm728, %v715
  %781 = vst.msk [vmem:[%s3 + $0x1a0] sm:$0xff] %vm728, %v716
  %782 = vst.msk [vmem:[%s3 + $0x1a8] sm:$0xff] %vm728, %v717
  %783 = vst.msk [vmem:[%s3 + $0x1b0] sm:$0xff] %vm728, %v718
  %784 = vst.msk [vmem:[%s3 + $0x1b8] sm:$0xff] %vm728, %v719
  %785 = vst.msk [vmem:[%s3 + $0x1c0] sm:$0xff] %vm728, %v720
  %786 = vst.msk [vmem:[%s3 + $0x1c8] sm:$0xff] %vm728, %v721
  %787 = vst.msk [vmem:[%s3 + $0x1d0] sm:$0xff] %vm728, %v722
  %788 = vst.msk [vmem:[%s3 + $0x1d8] sm:$0xff] %vm728, %v723
  %789 = vst.msk [vmem:[%s3 + $0x1e0] sm:$0xff] %vm728, %v724
  %790 = vst.msk [vmem:[%s3 + $0x1e8] sm:$0xff] %vm728, %v725
  %791 = vst.msk [vmem:[%s3 + $0x1f0] sm:$0xff] %vm728, %v726
  %792 = vst.msk [vmem:[%s3 + $0x1f8] sm:$0xff] %vm728, %v727
  // Predicated region
  $region14: #{tpu_custom_call.1} parent=0 // pred_check
    _
  $region15: #{tpu_custom_call.1} parent=0 // pred_check_branch
    %794 = sbr.rel (0) target = $region17
  $region16: #{tpu_custom_call.1} parent=0 // pred_region
    _
  $region17: #{tpu_custom_call.1} parent=0 // pred_fallthru
    _
  // Predicated region
  $region18: #{tpu_custom_call.1} parent=0 // pred_check
    _
  $region19: #{tpu_custom_call.1} parent=0 // pred_check_branch
    %796 = sbr.rel (0) target = $region21
  $region20: #{tpu_custom_call.1} parent=0 // pred_region
    _
  $region21: #{tpu_custom_call.1} parent=0 // pred_fallthru
    _

</llo_original>
